<compile_context>
chip_gen: v7x
topology: tpu7x:2x2x1
jax: 0.10.0
libtpu: 0.0.40
codegen_flags: <defaults>
</compile_context>

<pallas_src>
import functools

import jax
import jax.numpy as jnp
from jax.experimental import pallas as pl
from jax.experimental.pallas import tpu as pltpu


_SUBLANE_ROWS = 16  # bf16 row-packing granularity (one packed vreg = 16 rows)


def _rmsnorm_kernel(x_ref, w_ref, o_ref, *, eps, strict_parity):
    # x_ref: (tile_rows, H) input tile; w_ref: (1, H) f32 weight (VMEM-resident);
    # o_ref: (tile_rows, H) output tile.
    x = x_ref[...].astype(jnp.float32)
    var = jnp.mean(x * x, axis=-1, keepdims=True)
    inv = jax.lax.rsqrt(var + eps)
    normed = x * inv
    if strict_parity:
        # Module parity: normalized activations are rounded to bf16 before the
        # f32-weight multiply (exactly what this PyTorch forward does).
        normed = normed.astype(jnp.bfloat16).astype(jnp.float32)
    out = w_ref[...] * normed
    o_ref[...] = out if out.dtype == o_ref.dtype else out.astype(o_ref.dtype)


def _round_up(x, m):
    return -(-x // m) * m


def _vmem_budgets():
    """Returns (vmem_limit_bytes, tile_budget_bytes) derived from the hardware."""
    try:
        cap = pltpu.get_tpu_info().vmem_capacity_bytes  # 128 MiB v5e/v6e, 64 MiB/TC v7x
    except Exception:  # query unavailable (e.g. interpret mode) -> conservative v7x value
        cap = 64 << 20
    vmem_limit = min(cap * 3 // 4, 64 << 20)  # ~48 MiB on v7x, 64 MiB on v5e/v6e
    tile_budget = vmem_limit * 3 // 4         # headroom for compiler scratch / epilogue
    return vmem_limit, tile_budget


def _pick_tile_rows(rows, H, in_itemsize, out_itemsize, tile_budget_bytes,
                    min_grid_steps=4):
    """Largest multiple-of-16 row tile whose full VMEM footprint fits the budget."""
    # Per-row VMEM footprint:
    #   double-buffered input + output DMA tiles : 2 * (in + out) * H
    #   kernel-body f32 intermediates            : ~2 * 4 * H   (x upcast, normed)
    per_row = 2 * H * (in_itemsize + out_itemsize) + 2 * H * 4
    tile = (tile_budget_bytes // per_row) // _SUBLANE_ROWS * _SUBLANE_ROWS
    tile = max(_SUBLANE_ROWS, min(tile, 1024))  # >=1024 rows is already at roofline
    rows_padded = _round_up(rows, _SUBLANE_ROWS)
    # Guarantee several grid steps when the data allows it: a 1-step grid has no
    # DMA/compute overlap and starves the second v7x TensorCore.
    tile = min(tile, max(_SUBLANE_ROWS,
                         _round_up(rows_padded // min_grid_steps, _SUBLANE_ROWS)))
    return min(tile, rows_padded)  # don't tile past the data


def llama_fast_rmsnorm(hidden_states, weight, eps=1e-6, *, strict_parity=False,
                       tile_rows=None):
    """hidden_states: (B, S, H); weight: (H,).

    Returns (B, S, H) in bfloat16 (default fast path) or float32
    (strict_parity=True: exact PyTorch-module numerics and dtype).
    """
    B, S, H = hidden_states.shape
    assert H % 128 == 0, "hidden size must be a multiple of 128 (TPU lane constraint)"
    rows = B * S
    out_dtype = jnp.float32 if strict_parity else jnp.bfloat16

    x2d = hidden_states.reshape(rows, H)
    w2d = weight.astype(jnp.float32).reshape(1, H)

    vmem_limit, tile_budget = _vmem_budgets()
    in_itemsize = jnp.dtype(hidden_states.dtype).itemsize
    out_itemsize = jnp.dtype(out_dtype).itemsize
    if tile_rows is None:
        tile_rows = _pick_tile_rows(rows, H, in_itemsize, out_itemsize, tile_budget)
    assert tile_rows % _SUBLANE_ROWS == 0, \
        "tile_rows must be a multiple of 16 (bf16 sublane packing)"

    grid = (pl.cdiv(rows, tile_rows),)  # ragged last block handled by Pallas masking

    kernel = functools.partial(_rmsnorm_kernel, eps=eps, strict_parity=strict_parity)

    # Advisory hint: memory-bound streaming op (one rsqrt per row).
    cost = pl.CostEstimate(
        flops=3 * rows * H,
        transcendentals=rows,
        bytes_accessed=rows * H * (in_itemsize + out_itemsize) + H * 4,
    )

    out2d = pl.pallas_call(
        kernel,
        out_shape=jax.ShapeDtypeStruct((rows, H), out_dtype),
        grid_spec=pltpu.PrefetchScalarGridSpec(
            num_scalar_prefetch=0,
            grid=grid,
            in_specs=[
                # TODO(synk): if traces show exposed DMA latency at small tiles,
                # add pipeline_mode=pl.Buffered(3) to this activation spec.
                pl.BlockSpec((tile_rows, H), lambda i: (i, 0)),
                pl.BlockSpec((1, H), lambda i: (0, 0)),  # weight stays resident
            ],
            out_specs=pl.BlockSpec((tile_rows, H), lambda i: (i, 0)),
        ),
        compiler_params=pltpu.CompilerParams(
            # Rows are embarrassingly parallel -> shard across v7x's two
            # TensorCores; neutral on single-TC v5e/v6e.
            # TODO(synk): confirm via xprof that both v7x TCs get work; switch to
            # pltpu.CORE_PARALLEL if one sits idle.
            dimension_semantics=("parallel",),
            vmem_limit_bytes=vmem_limit,
        ),
        cost_estimate=cost,
    )(x2d, w2d)

    return out2d.reshape(B, S, H)


def _reference_strict(hidden_states, weight, eps=1e-6):
    x = hidden_states.astype(jnp.float32)
    var = jnp.mean(x * x, axis=-1, keepdims=True)
    x = x * jax.lax.rsqrt(var + eps)
    return weight.astype(jnp.float32) * x.astype(jnp.bfloat16).astype(jnp.float32)


if __name__ == "__main__":
    # Small shapes: batch=2, seq=8 (< 128 -> the pure-RMSNorm module branch), hidden=128.
    B, S, H = 2, 8, 128
    key = jax.random.PRNGKey(0)
    x = jax.random.normal(key, (B, S, H), dtype=jnp.bfloat16)
    # Deterministic parameter init matching nn.Parameter(torch.ones(hidden_size)).
    weight = jnp.ones((H,), dtype=jnp.float32)

    ref = _reference_strict(x, weight, eps=1e-6)

    # Fast path: bf16 output, no bf16 round-trip inside the kernel.
    out_fast = jax.block_until_ready(llama_fast_rmsnorm(x, weight, eps=1e-6))
    assert out_fast.shape == (B, S, H) and out_fast.dtype == jnp.bfloat16
    assert jnp.allclose(out_fast.astype(jnp.float32), ref, atol=2e-2, rtol=2e-2), \
        "fast-path mismatch vs reference"

    # Strict-parity path: exact PyTorch-module numerics and float32 dtype.
    out_strict = jax.block_until_ready(
        llama_fast_rmsnorm(x, weight, eps=1e-6, strict_parity=True))
    assert out_strict.shape == (B, S, H) and out_strict.dtype == jnp.float32
    assert jnp.allclose(out_strict, ref, atol=1e-2, rtol=1e-2), \
        "strict-parity mismatch vs reference"

    # Ragged-grid check: rows (=20) not a multiple of tile_rows (=16), exercising
    # the cdiv grid with a masked partial last block.
    x2 = jax.random.normal(jax.random.PRNGKey(1), (1, 20, H), dtype=jnp.bfloat16)
    out2 = jax.block_until_ready(
        llama_fast_rmsnorm(x2, weight, eps=1e-6, strict_parity=True, tile_rows=16))
    ref2 = _reference_strict(x2, weight, eps=1e-6)
    assert jnp.allclose(out2, ref2, atol=1e-2, rtol=1e-2), "ragged-grid mismatch"

    print("KERNEL_OK")
</pallas_src>

<mosaic_0001>
module attributes {stable_mosaic.version = 11 : i64} {
  func.func @_rmsnorm_kernel(%arg0: i32, %arg1: memref<16x128xbf16, #tpu.memory_space<vmem>>, %arg2: memref<1x128xf32, #tpu.memory_space<vmem>>, %arg3: memref<16x128xbf16, #tpu.memory_space<vmem>>) attributes {dimension_semantics = [#tpu.dimension_semantics<parallel>], iteration_bounds = array<i64: 1>, scalar_prefetch = 0 : i64, scratch_operands = 0 : i64, tpu.core_type = #tpu.core_type<tc>, window_params = [{transform_indices = @transform_0, window_bounds = array<i64: 16, 128>}, {pipeline_mode = #tpu.pipeline_mode<synchronous>, transform_indices = @transform_1, window_bounds = array<i64: 1, 128>}, {transform_indices = @transform_2, window_bounds = array<i64: 16, 128>}]} {
    %c0 = arith.constant 0 : index
    %c0_0 = arith.constant 0 : index
    %0 = vector.load %arg1[%c0, %c0_0] : memref<16x128xbf16, #tpu.memory_space<vmem>>, vector<16x128xbf16>
    %1 = arith.extf %0 : vector<16x128xbf16> to vector<16x128xf32>
    %2 = arith.mulf %1, %1 : vector<16x128xf32>
    %cst = arith.constant dense<0.000000e+00> : vector<16xf32>
    %3 = vector.multi_reduction <add>, %2, %cst [1] : vector<16x128xf32> to vector<16xf32>
    %4 = vector.shape_cast %3 : vector<16xf32> to vector<16x1xf32>
    %cst_1 = arith.constant 1.280000e+02 : f32
    %5 = vector.broadcast %cst_1 : f32 to vector<16x1xf32>
    %6 = arith.divf %4, %5 : vector<16x1xf32>
    %cst_2 = arith.constant 9.99999997E-7 : f32
    %7 = vector.broadcast %cst_2 : f32 to vector<16x1xf32>
    %8 = arith.addf %6, %7 : vector<16x1xf32>
    %9 = math.rsqrt %8 : vector<16x1xf32>
    %10 = vector.broadcast %9 : vector<16x1xf32> to vector<16x128xf32>
    %11 = arith.mulf %1, %10 : vector<16x128xf32>
    %c0_3 = arith.constant 0 : index
    %c0_4 = arith.constant 0 : index
    %12 = vector.load %arg2[%c0_3, %c0_4] : memref<1x128xf32, #tpu.memory_space<vmem>>, vector<1x128xf32>
    %13 = vector.broadcast %12 : vector<1x128xf32> to vector<16x128xf32>
    %14 = arith.mulf %13, %11 : vector<16x128xf32>
    %15 = arith.truncf %14 : vector<16x128xf32> to vector<16x128xbf16>
    %c0_5 = arith.constant 0 : index
    %c0_6 = arith.constant 0 : index
    %16 = vector.load %arg3[%c0_5, %c0_6] : memref<16x128xbf16, #tpu.memory_space<vmem>>, vector<16x128xbf16>
    tpu.vector_store %arg3[%c0_5, %c0_6], %15 {strides = array<i32>} : memref<16x128xbf16, #tpu.memory_space<vmem>>, vector<16x128xbf16>,
    return
  }
  func.func @transform_0(%arg0: i32) -> (i32, i32) {
    %c0_i32 = arith.constant 0 : i32
    %c0_i32_0 = arith.constant 0 : i32
    return %arg0, %c0_i32 : i32, i32
  }
  func.func @transform_1(%arg0: i32) -> (i32, i32) {
    %c0_i32 = arith.constant 0 : i32
    %c0_i32_0 = arith.constant 0 : i32
    %c0_i32_1 = arith.constant 0 : i32
    return %c0_i32, %c0_i32_0 : i32, i32
  }
  func.func @transform_2(%arg0: i32) -> (i32, i32) {
    %c0_i32 = arith.constant 0 : i32
    %c0_i32_0 = arith.constant 0 : i32
    return %arg0, %c0_i32 : i32, i32
  }
}

</mosaic_0001>

<llo_original>
// kernel: tpu_custom_call.1
$region0: #{tpu_custom_call.1}
  #allocation0 [shape = 'u32[]', space=smem, size = 0x4, offset = 0x4, fixed_abs, tag = 'smem constant byte address 0x4 - core index']
  #allocation1 [shape = 'u32[144,128]{1,0:T(1,128)}', space=vmem, size = 0x12000, scoped, tag = 'internal scratch']
  %s0 = inlined_call_operand.hbm [shape: bf16[16,128], index: 0, kind: input, shape index: {}]
  %s1 = inlined_call_operand.vmem [shape: f32[1,128], index: 1, kind: input, shape index: {}]
  %s2 = inlined_call_operand.hbm [shape: bf16[16,128], index: 2, kind: output, shape index: {}]
  %s3 = sld [smem:[#allocation0]]
  $region22: #{tpu_custom_call.1} parent=0
    _
  %s5 = ssub.s32 1, %s3
  %s6 = scalar_select 0, %s5, %s3
  $region1: #{tpu_custom_call.1} parent=0
    #allocation2 [shape = 'u8[4096]{0}', space=vmem, size = 0x1000, scoped, tag = 'input window, operand 0, single buffered']
    #allocation3 [shape = 's32[1]{0}', space=sflag, size = 0x4, scoped, tag = 'scoped memory for tpu_custom_call.1']
    #allocation4 [shape = 's32[1]{0}', space=sflag, size = 0x4, scoped, tag = 'scoped memory for tpu_custom_call.1']
    #allocation5 [shape = 'u8[4096]{0}', space=vmem, size = 0x1000, scoped, tag = 'output window, operand 0, single buffered']
    %7 = vsyncpa [#allocation3], 0
    %8 = vsyncpa [#allocation4], 0
    // Predicated region
    $region2: #{tpu_custom_call.1} parent=1 // pred_check
      _
    $region3: #{tpu_custom_call.1} parent=1 // pred_check_branch
      %10 = sbr.rel (0) target = $region5
    $region4: #{tpu_custom_call.1} parent=1 // pred_region
      %s12 = ssub.s32 128, 128
      %13 = vsyncadd [#allocation3], %s12
      %s14 = sshll.u32 [#allocation2], 4
      %s15 = int_to_ptr.vmem [resolvable:$true] %s14
      %20 = dma.hbm_to_vmem [thread:$0]  %s0, 128, %s15, [#allocation3], 64, 64, 4
    $region5: #{tpu_custom_call.1} parent=1 // pred_fallthru
      _
    // Predicated region
    $region6: #{tpu_custom_call.1} parent=1 // pred_check
      _
    $region7: #{tpu_custom_call.1} parent=1 // pred_check_branch
      %22 = sbr.rel (0) target = $region9
    $region8: #{tpu_custom_call.1} parent=1 // pred_region
      _
    $region9: #{tpu_custom_call.1} parent=1 // pred_fallthru
      _
    // Predicated region
    $region10: #{tpu_custom_call.1} parent=1 // pred_check
      _
    $region11: #{tpu_custom_call.1} parent=1 // pred_check_branch
      %24 = sbr.rel (0) target = $region13
    $region12: #{tpu_custom_call.1} parent=1 // pred_region
      %25 = dma.done [#allocation3], 128
    $region13: #{tpu_custom_call.1} parent=1 // pred_fallthru
      _
    %v26 = vld [vmem:[#allocation2] sm:$0xf]
    %v27 = vld [vmem:[#allocation2 + $0x4] sm:$0xf]
    %v28 = vunpack.c.l.bf16 %v26
    %v29 = vunpack.c.l.bf16 %v27
    %v30 = vmul.f32 %v28, %v28
    %v31 = vmul.f32 %v29, %v29
    %32 = vadd.xlane.f32.xlu0 %v30
    %v33 = vpop.xlane.xlu0 %32
    %34 = vadd.xlane.f32.xlu0 %v31
    %v35 = vpop.xlane.xlu0 %34
    %v36 = vrcp.pop 128.0
    %v37 = vmul.f32 %v33, %v36
    %v38 = vmul.f32 %v35, %v36
    %v39 = vadd.f32 %v37, 1e-06
    %v40 = vadd.f32 %v38, 1e-06
    %v41 = vrsqrt.pop %v39
    %v42 = vrsqrt.pop %v40
    %v43 = vmul.f32 %v28, %v41
    %v44 = vmul.f32 %v29, %v42
    %v45 = vld [vmem:[%s1] sm:$0x1]
    %v47 = vlaneseq
    %v48 = vshrl.u32 %v47, 7
    %v49 = vsub.s32 0, %v48
    %v50 = vrot.slane %v45, %v49
    %v52 = vmul.f32 %v50, %v43
    %v53 = vmul.f32 %v50, %v44
    %v54 = vpack.c.bf16 %v53, %v52
    %v56 = vunpack.c.l.b16 %v54
    %v57 = vunpack.c.h.b16 %v54
    %v58 = vpack.c.b16 %v56, %v56
    %v59 = vpack.c.b16 %v57, %v57
    %62 = vst [vmem:[#allocation5] sm:$0xf] %v58
    %63 = vst [vmem:[#allocation5 + $0x4] sm:$0xf] %v59
    // Predicated region
    $region14: #{tpu_custom_call.1} parent=1 // pred_check
      _
    $region15: #{tpu_custom_call.1} parent=1 // pred_check_branch
      %65 = sbr.rel (0) target = $region17
    $region16: #{tpu_custom_call.1} parent=1 // pred_region
      %s67 = ssub.s32 128, 128
      %68 = vsyncadd [#allocation4], %s67
      %s69 = sshll.u32 [#allocation5], 4
      %s70 = int_to_ptr.vmem [resolvable:$true] %s69
      %75 = dma.vmem_to_hbm [thread:$0]  %s70, 128, %s2, [#allocation4], 64, 64, 4
    $region17: #{tpu_custom_call.1} parent=1 // pred_fallthru
      _
    // Predicated region
    $region18: #{tpu_custom_call.1} parent=1 // pred_check
      _
    $region19: #{tpu_custom_call.1} parent=1 // pred_check_branch
      %77 = sbr.rel (0) target = $region21
    $region20: #{tpu_custom_call.1} parent=1 // pred_region
      %78 = dma.done [#allocation4], 128
    $region21: #{tpu_custom_call.1} parent=1 // pred_fallthru
      _
    %79 = vsyncpa [#allocation3], 1
    %80 = vsyncpa [#allocation4], 1

</llo_original>
